<compile_context>
chip_gen: v7x
topology: tpu7x:2x2x1
jax: 0.10.0
libtpu: 0.0.40
codegen_flags: <defaults>
</compile_context>

<pallas_src>
import jax
import jax.numpy as jnp
from jax.experimental import pallas as pl
from jax.experimental.pallas import tpu as pltpu

_LANES = 1024                        # lane-dense slab width (multiple of 128)
_TILE_ROWS = 1024                    # 1024 x 1024 f32 tile = 4 MiB per buffer
_SMALL_ELEMS = _LANES * _TILE_ROWS   # <= ~4 MiB f32: single-block path


def _add_one_kernel(x_ref, o_ref):
    # Elementwise VPU op over the whole VMEM tile; +1 cast to output dtype.
    o_ref[...] = x_ref[...] + jnp.asarray(1, dtype=o_ref.dtype)


def _add_one_single_block(x2d):
    """Whole (small) array as a single VMEM block: no grid, no per-step overhead."""
    return pl.pallas_call(
        _add_one_kernel,
        out_shape=jax.ShapeDtypeStruct(x2d.shape, x2d.dtype),
        compiler_params=pltpu.CompilerParams(
            vmem_limit_bytes=32 * 1024 * 1024,
        ),
    )(x2d)


def _add_one_tiled(x2d, *, tile_rows=_TILE_ROWS):
    """1-D grid over rows; each block spans the full lane dimension."""
    rows, cols = x2d.shape
    grid = (pl.cdiv(rows, tile_rows),)
    return pl.pallas_call(
        _add_one_kernel,
        out_shape=jax.ShapeDtypeStruct((rows, cols), x2d.dtype),
        grid_spec=pltpu.PrefetchScalarGridSpec(
            num_scalar_prefetch=0,
            grid=grid,
            in_specs=[pl.BlockSpec((tile_rows, cols), lambda i: (i, 0))],
            out_specs=pl.BlockSpec((tile_rows, cols), lambda i: (i, 0)),
        ),
        compiler_params=pltpu.CompilerParams(
            # "parallel" lets v7x shard the row loop across its 2 TensorCores.
            dimension_semantics=("parallel",),
            # ~16 MiB of double-buffered in/out tiles + headroom; raises v5e's
            # 16 MiB default scoped limit, stays well under v7x's 64 MiB VMEM.
            vmem_limit_bytes=32 * 1024 * 1024,
        ),
    )(x2d)


def simple_nn(x):
    """Matches SimpleNN.forward(input) = input + 1 for any-rank input."""
    orig_shape = x.shape
    n = x.size
    if n == 0:
        return x
    flat = x.reshape(-1)

    if n <= _SMALL_ELEMS:
        # Small input: pad to full 128-lane rows and run as one VMEM block.
        rows = pl.cdiv(n, 128)
        padded = rows * 128
        if padded != n:
            flat = jnp.pad(flat, (0, padded - n))
        out = _add_one_single_block(flat.reshape(rows, 128))
    else:
        # Large input: lane-dense slab of width _LANES, 4 MiB tiles over rows.
        rows = pl.cdiv(n, _LANES)
        padded = rows * _LANES
        if padded != n:
            flat = jnp.pad(flat, (0, padded - n))
        out = _add_one_tiled(flat.reshape(rows, _LANES))

    if out.size != n:
        out = out.reshape(-1)[:n]
    return out.reshape(orig_shape)


if __name__ == "__main__":
    key = jax.random.PRNGKey(0)

    # Small NCHW-like input consistent with a generic nn.Module forward.
    x = jax.random.normal(key, (2, 4, 16, 16), dtype=jnp.float32)
    y = simple_nn(x)
    jax.block_until_ready(y)
    assert y.shape == x.shape and y.dtype == x.dtype
    assert jnp.allclose(y, x + 1.0), "mismatch vs reference (small path)"

    # Also exercise the tiled path (padding + partial last block).
    x_big = jax.random.normal(key, (3, 700, 1111), dtype=jnp.float32)
    y_big = simple_nn(x_big)
    jax.block_until_ready(y_big)
    assert jnp.allclose(y_big, x_big + 1.0), "mismatch vs reference (tiled path)"

    print("KERNEL_OK")
</pallas_src>

<mosaic_0001>
module attributes {stable_mosaic.version = 11 : i64} {
  func.func @_add_one_kernel(%arg0: memref<16x128xf32, #tpu.memory_space<vmem>>, %arg1: memref<16x128xf32, #tpu.memory_space<vmem>>) attributes {dimension_semantics = [], scalar_prefetch = 0 : i64, scratch_operands = 0 : i64, tpu.core_type = #tpu.core_type<tc>} {
    %c0 = arith.constant 0 : index
    %c0_0 = arith.constant 0 : index
    %0 = vector.load %arg0[%c0, %c0_0] : memref<16x128xf32, #tpu.memory_space<vmem>>, vector<16x128xf32>
    %cst = arith.constant 1.000000e+00 : f32
    %1 = vector.broadcast %cst : f32 to vector<16x128xf32>
    %2 = arith.addf %0, %1 : vector<16x128xf32>
    %c0_1 = arith.constant 0 : index
    %c0_2 = arith.constant 0 : index
    %3 = vector.load %arg1[%c0_1, %c0_2] : memref<16x128xf32, #tpu.memory_space<vmem>>, vector<16x128xf32>
    tpu.vector_store %arg1[%c0_1, %c0_2], %2 {strides = array<i32>} : memref<16x128xf32, #tpu.memory_space<vmem>>, vector<16x128xf32>,
    return
  }
}

</mosaic_0001>

<llo_original>
// kernel: tpu_custom_call.1
$region0: #{tpu_custom_call.1}
  #allocation0 [shape = 'u32[]', space=smem, size = 0x4, offset = 0x4, fixed_abs, tag = 'smem constant byte address 0x4 - core index']
  #allocation1 [shape = 'u32[144,128]{1,0:T(1,128)}', space=vmem, size = 0x12000, scoped, tag = 'internal scratch']
  %s0 = inlined_call_operand.hbm [shape: f32[16,128], index: 0, kind: input, shape index: {}]
  %s1 = inlined_call_operand.hbm [shape: f32[16,128], index: 1, kind: output, shape index: {}]
  %s2 = sld [smem:[#allocation0]]
  $region18: #{tpu_custom_call.1} parent=0
    _
  %s4 = ssub.s32 1, %s2
  %s5 = scalar_select 0, %s4, %s2
  $region1: #{tpu_custom_call.1} parent=0
    #allocation2 [shape = 'u8[8192]{0}', space=vmem, size = 0x2000, scoped, tag = 'input window, operand 0, single buffered']
    #allocation3 [shape = 's32[1]{0}', space=sflag, size = 0x4, scoped, tag = 'scoped memory for tpu_custom_call.1']
    #allocation4 [shape = 's32[1]{0}', space=sflag, size = 0x4, scoped, tag = 'scoped memory for tpu_custom_call.1']
    #allocation5 [shape = 'u8[8192]{0}', space=vmem, size = 0x2000, scoped, tag = 'output window, operand 0, single buffered']
    %6 = vsyncpa [#allocation3], 0
    %7 = vsyncpa [#allocation4], 0
    // Predicated region
    $region2: #{tpu_custom_call.1} parent=1 // pred_check
      _
    $region3: #{tpu_custom_call.1} parent=1 // pred_check_branch
      %9 = sbr.rel (0) target = $region5
    $region4: #{tpu_custom_call.1} parent=1 // pred_region
      %s11 = ssub.s32 256, 256
      %12 = vsyncadd [#allocation3], %s11
      %s13 = sshll.u32 [#allocation2], 4
      %s14 = int_to_ptr.vmem [resolvable:$true] %s13
      %19 = dma.hbm_to_vmem [thread:$0]  %s0, 256, %s14, [#allocation3], 128, 128, 8
    $region5: #{tpu_custom_call.1} parent=1 // pred_fallthru
      _
    // Predicated region
    $region6: #{tpu_custom_call.1} parent=1 // pred_check
      _
    $region7: #{tpu_custom_call.1} parent=1 // pred_check_branch
      %21 = sbr.rel (0) target = $region9
    $region8: #{tpu_custom_call.1} parent=1 // pred_region
      %22 = dma.done [#allocation3], 256
    $region9: #{tpu_custom_call.1} parent=1 // pred_fallthru
      _
    %v23 = vld [vmem:[#allocation2] sm:$0xff]
    %v24 = vld [vmem:[#allocation2 + $0x8] sm:$0xff]
    %v25 = vadd.f32 %v23, 1.0
    %v26 = vadd.f32 %v24, 1.0
    %27 = vst [vmem:[#allocation5] sm:$0xff] %v25
    %28 = vst [vmem:[#allocation5 + $0x8] sm:$0xff] %v26
    // Predicated region
    $region10: #{tpu_custom_call.1} parent=1 // pred_check
      _
    $region11: #{tpu_custom_call.1} parent=1 // pred_check_branch
      %30 = sbr.rel (0) target = $region13
    $region12: #{tpu_custom_call.1} parent=1 // pred_region
      %s32 = ssub.s32 256, 256
      %33 = vsyncadd [#allocation4], %s32
      %s34 = sshll.u32 [#allocation5], 4
      %s35 = int_to_ptr.vmem [resolvable:$true] %s34
      %40 = dma.vmem_to_hbm [thread:$0]  %s35, 256, %s1, [#allocation4], 128, 128, 8
    $region13: #{tpu_custom_call.1} parent=1 // pred_fallthru
      _
    // Predicated region
    $region14: #{tpu_custom_call.1} parent=1 // pred_check
      _
    $region15: #{tpu_custom_call.1} parent=1 // pred_check_branch
      %42 = sbr.rel (0) target = $region17
    $region16: #{tpu_custom_call.1} parent=1 // pred_region
      %43 = dma.done [#allocation4], 256
    $region17: #{tpu_custom_call.1} parent=1 // pred_fallthru
      _
    %44 = vsyncpa [#allocation3], 1
    %45 = vsyncpa [#allocation4], 1

</llo_original>
